<compile_context>
chip_gen: v7x
topology: tpu7x:2x2x1
jax: 0.10.0
libtpu: 0.0.40
codegen_flags: <defaults>
</compile_context>

<pallas_src>
import functools

import jax
import jax.numpy as jnp
import numpy as np
from jax import lax
from jax.experimental import pallas as pl
from jax.experimental.pallas import tpu as pltpu

NEG_INF = -1e30  # finite "minus infinity" for masking (avoids inf-inf NaNs)


def _pick_tile(n, cap):
    """Largest tile <= cap dividing n, else the whole axis."""
    for t in (1024, 512, 256, 128, 64, 32, 16, 8):
        if t <= cap and n % t == 0:
            return t
    return n


# --------------------------------------------------------------------------
# Kernel 1: RMSNorm + fused per-head QKV projection (head-major bf16 outputs)
# --------------------------------------------------------------------------
def _rmsnorm_qkv_kernel(x_ref, gamma_ref, wqkv_ref, q_ref, k_ref, v_ref,
                        normed_sc, *, eps, dim_head):
    # grid = (batch, row_tile, head); head innermost & 'arbitrary' so the
    # RMSNorm result cached in normed_sc stays valid across the head sweep.
    hi = pl.program_id(2)

    @pl.when(hi == 0)
    def _():
        x = x_ref[0]                                           # (tn, dim) f32
        ms = jnp.mean(x * x, axis=-1, keepdims=True)
        normed = x * lax.rsqrt(ms + eps) * gamma_ref[...]      # f32 norm * gamma
        normed_sc[...] = normed.astype(jnp.bfloat16)           # bf16 MXU operand

    d = dim_head
    normed = normed_sc[...]                                    # (tn, dim) bf16
    # Single fused projection: N = 3*d (vs. three N=d dots).  Scale is folded
    # into the Q columns of the weight at trace time.
    qkv = jnp.dot(normed, wqkv_ref[0],
                  preferred_element_type=jnp.float32)          # (tn, 3d) f32
    q_ref[0, 0] = qkv[:, :d].astype(jnp.bfloat16)
    k_ref[0, 0] = qkv[:, d:2 * d].astype(jnp.bfloat16)
    v_ref[0, 0] = qkv[:, 2 * d:].astype(jnp.bfloat16)


# --------------------------------------------------------------------------
# Kernel 2: flash attention (online softmax, heads in-kernel) + out projection
# --------------------------------------------------------------------------
def _flash_attn_kernel(q_ref, k_ref, v_ref, wout_ref, o_ref,
                       m_sc, l_sc, acc_sc, packed_sc,
                       *, heads, dim_head, tq, tk):
    # grid = (batch, q_tile, kv_tile); kv innermost.  All heads are processed
    # inside one grid step (fori_loop) against per-head scratch.
    qi = pl.program_id(1)
    ki = pl.program_id(2)
    d = dim_head
    q_start = qi * tq
    k_start = ki * tk
    last_needed = (q_start + tq - 1) // tk   # last kv block in the causal band

    @pl.when(ki == 0)
    def _():  # fresh softmax state (all heads) for this (batch, q_tile)
        m_sc[...] = jnp.full(m_sc.shape, NEG_INF, m_sc.dtype)
        l_sc[...] = jnp.zeros(l_sc.shape, l_sc.dtype)
        acc_sc[...] = jnp.zeros(acc_sc.shape, acc_sc.dtype)

    def process_tile(apply_mask):
        if apply_mask:  # only materialize the mask on diagonal-straddling tiles
            row = q_start + lax.broadcasted_iota(jnp.int32, (tq, tk), 0)
            col = k_start + lax.broadcasted_iota(jnp.int32, (tq, tk), 1)
            causal = col <= row

        def head_body(hh, carry):
            qh = q_ref[0, hh]                                  # (tq, d) bf16 (scale folded)
            kh = k_ref[0, hh]                                  # (tk, d) bf16
            vh = v_ref[0, hh]                                  # (tk, d) bf16
            s = lax.dot_general(qh, kh, (((1,), (1,)), ((), ())),
                                preferred_element_type=jnp.float32)   # (tq, tk) f32
            if apply_mask:
                s = jnp.where(causal, s, NEG_INF)
            m_prev = m_sc[hh]                                  # (tq, 1) f32
            m_new = jnp.maximum(m_prev, jnp.max(s, axis=-1, keepdims=True))
            alpha = jnp.exp(m_prev - m_new)                    # f32 (tiny)
            # bf16 exp argument -> bf16 EUP path on v6e/v7x; stats stay f32.
            p = jnp.exp((s - m_new).astype(jnp.bfloat16))      # (tq, tk) bf16
            l_sc[hh] = alpha * l_sc[hh] + jnp.sum(
                p.astype(jnp.float32), axis=-1, keepdims=True)
            acc_sc[hh] = alpha * acc_sc[hh] + jnp.dot(
                p, vh, preferred_element_type=jnp.float32)
            m_sc[hh] = m_new
            return carry

        lax.fori_loop(0, heads, head_body, 0)

    needed = k_start <= q_start + tq - 1            # tile has any unmasked entry
    straddles = k_start + tk - 1 > q_start          # tile crosses the diagonal

    @pl.when(jnp.logical_and(needed, straddles))
    def _():
        process_tile(apply_mask=True)

    @pl.when(jnp.logical_and(needed, jnp.logical_not(straddles)))
    def _():
        process_tile(apply_mask=False)               # fully-in-the-past fast path

    @pl.when(ki == last_needed)
    def _():
        # Deferred normalization, pack heads (static lane offsets), then one
        # full-width (tq, h*d) @ (h*d, dim) output projection.
        for hh in range(heads):                      # static Python unroll
            inv_l = pl.reciprocal(l_sc[hh], approx=True)        # EUP (~free)
            packed_sc[:, hh * d:(hh + 1) * d] = (
                acc_sc[hh] * inv_l).astype(jnp.bfloat16)
        o_ref[0] = jnp.dot(packed_sc[...], wout_ref[...],
                           preferred_element_type=jnp.float32)


# --------------------------------------------------------------------------
# Wrapper
# --------------------------------------------------------------------------
def attention_forward(x, gamma, w_qkv, w_out, *, heads, dim_head,
                      eps=float(np.finfo(np.float32).eps)):
    """x: (b, n, dim) f32. w_qkv: (dim, 3*heads*dim_head). w_out: (heads*dim_head, dim)."""
    b, n, dim = x.shape
    h, d = heads, dim_head
    scale = float(d) ** -0.5

    # Trace-time weight re-layout (one-off constants for inference):
    #   columns of w_qkv decompose as (qkv=3, h, d); fold the 1/sqrt(d) scale
    #   into the Q slice and concatenate per head to a (h, dim, 3d) weight.
    w3 = w_qkv.reshape(dim, 3, h, d)
    wq = w3[:, 0] * scale
    wk = w3[:, 1]
    wv = w3[:, 2]
    wqkv_h = jnp.concatenate([wq, wk, wv], axis=-1)                   # (dim, h, 3d)
    wqkv_h = jnp.transpose(wqkv_h, (1, 0, 2)).astype(jnp.bfloat16)    # (h, dim, 3d)
    wo = w_out.astype(jnp.bfloat16)                                   # (h*d, dim), rows (h d)-major
    gamma2d = gamma.reshape(1, dim).astype(jnp.float32)

    tn = _pick_tile(n, 1024)          # kernel 1 row tile (bigger = less weight re-streaming)
    tq = tk = _pick_tile(n, 256)      # kernel 2 tiles (heads already inside the kernel)
    vmem_limit = 40 * 1024 * 1024     # safe on v7x's 64 MiB per TC (and v5e/v6e)

    # ---- kernel 1: RMSNorm + fused per-head QKV projection ----
    q_hm, k_hm, v_hm = pl.pallas_call(
        functools.partial(_rmsnorm_qkv_kernel, eps=eps, dim_head=d),
        out_shape=(
            jax.ShapeDtypeStruct((b, h, n, d), jnp.bfloat16),
            jax.ShapeDtypeStruct((b, h, n, d), jnp.bfloat16),
            jax.ShapeDtypeStruct((b, h, n, d), jnp.bfloat16),
        ),
        grid_spec=pltpu.PrefetchScalarGridSpec(
            num_scalar_prefetch=0,
            grid=(b, n // tn, h),
            in_specs=[
                pl.BlockSpec((1, tn, dim), lambda bi, ri, hi: (bi, ri, 0)),      # x
                pl.BlockSpec((1, dim), lambda bi, ri, hi: (0, 0)),               # gamma
                pl.BlockSpec((1, dim, 3 * d), lambda bi, ri, hi: (hi, 0, 0)),    # W_qkv[h]
            ],
            out_specs=[
                pl.BlockSpec((1, 1, tn, d), lambda bi, ri, hi: (bi, hi, ri, 0)),
                pl.BlockSpec((1, 1, tn, d), lambda bi, ri, hi: (bi, hi, ri, 0)),
                pl.BlockSpec((1, 1, tn, d), lambda bi, ri, hi: (bi, hi, ri, 0)),
            ],
            scratch_shapes=[pltpu.VMEM((tn, dim), jnp.bfloat16)],   # normed x cache
        ),
        compiler_params=pltpu.CompilerParams(
            dimension_semantics=("parallel", "parallel", "arbitrary"),
            vmem_limit_bytes=vmem_limit),
    )(x, gamma2d, wqkv_h)

    # ---- kernel 2: flash attention (heads in-kernel) + output projection ----
    # K/V block index is clamped to the last causally-needed kv tile so the
    # DMA of fully-masked tiles is elided (same block index as previous step).
    def kv_index_map(bi, qi, ki):
        return (bi, 0, jnp.minimum(ki, (qi * tq + tq - 1) // tk), 0)

    out = pl.pallas_call(
        functools.partial(_flash_attn_kernel, heads=h, dim_head=d, tq=tq, tk=tk),
        out_shape=jax.ShapeDtypeStruct((b, n, dim), jnp.float32),
        grid_spec=pltpu.PrefetchScalarGridSpec(
            num_scalar_prefetch=0,
            grid=(b, n // tq, n // tk),
            in_specs=[
                pl.BlockSpec((1, h, tq, d), lambda bi, qi, ki: (bi, 0, qi, 0)),  # q (all heads)
                pl.BlockSpec((1, h, tk, d), kv_index_map),                       # k (all heads)
                pl.BlockSpec((1, h, tk, d), kv_index_map),                       # v (all heads)
                pl.BlockSpec((h * d, dim), lambda bi, qi, ki: (0, 0)),           # W_out (resident)
            ],
            out_specs=pl.BlockSpec((1, tq, dim), lambda bi, qi, ki: (bi, qi, 0)),
            scratch_shapes=[
                pltpu.VMEM((h, tq, 1), jnp.float32),       # running max m (per head)
                pltpu.VMEM((h, tq, 1), jnp.float32),       # running sum l (per head)
                pltpu.VMEM((h, tq, d), jnp.float32),       # unnormalized p@v acc (per head)
                pltpu.VMEM((tq, h * d), jnp.bfloat16),     # packed heads for out-proj
            ],
        ),
        compiler_params=pltpu.CompilerParams(
            dimension_semantics=("parallel", "parallel", "arbitrary"),
            vmem_limit_bytes=vmem_limit),
    )(q_hm, k_hm, v_hm, wo)

    return out


# --------------------------------------------------------------------------
# Pure-JAX reference mirroring the module semantics with the kernel's
# precision policy (bf16 MXU operands, f32 accumulation, f32 softmax stats).
# --------------------------------------------------------------------------
def attention_reference(x, gamma, w_qkv, w_out, *, heads, dim_head,
                        eps=float(np.finfo(np.float32).eps)):
    b, n, dim = x.shape
    h, d = heads, dim_head
    scale = float(d) ** -0.5
    bf16 = jnp.bfloat16

    normed = (x * lax.rsqrt(jnp.mean(x * x, -1, keepdims=True) + eps)
              * gamma).astype(bf16)
    wq = (w_qkv[:, :h * d] * scale).astype(bf16)
    wk = w_qkv[:, h * d:2 * h * d].astype(bf16)
    wv = w_qkv[:, 2 * h * d:].astype(bf16)

    q = jnp.dot(normed, wq, preferred_element_type=jnp.float32).astype(bf16)
    k = jnp.dot(normed, wk, preferred_element_type=jnp.float32).astype(bf16)
    v = jnp.dot(normed, wv, preferred_element_type=jnp.float32).astype(bf16)
    q = q.reshape(b, n, h, d)
    k = k.reshape(b, n, h, d)
    v = v.reshape(b, n, h, d)

    s = jnp.einsum('bqhd,bkhd->bhqk', q, k, preferred_element_type=jnp.float32)
    mask = jnp.tril(jnp.ones((n, n), bool))
    s = jnp.where(mask[None, None], s, -jnp.inf)
    p = jax.nn.softmax(s, axis=-1).astype(bf16)

    out = jnp.einsum('bhqk,bkhd->bqhd', p, v, preferred_element_type=jnp.float32)
    out = out.reshape(b, n, h * d).astype(bf16)
    return jnp.dot(out, w_out.astype(bf16), preferred_element_type=jnp.float32)


if __name__ == "__main__":
    # small shapes consistent with the module
    batch, seq, dim = 2, 8, 32
    heads, dim_head = 2, 16
    dim_inner = heads * dim_head

    key = jax.random.PRNGKey(0)
    kx, kq, ko = jax.random.split(key, 3)

    x = jax.random.normal(kx, (batch, seq, dim), dtype=jnp.float32)
    gamma = jnp.ones((dim,), dtype=jnp.float32)  # nn.RMSNorm weight init
    w_qkv = jax.random.normal(kq, (dim, 3 * dim_inner), jnp.float32) * (dim ** -0.5)
    w_out = jax.random.normal(ko, (dim_inner, dim), jnp.float32) * (dim_inner ** -0.5)

    out = attention_forward(x, gamma, w_qkv, w_out, heads=heads, dim_head=dim_head)
    out = jax.block_until_ready(out)

    ref = attention_reference(x, gamma, w_qkv, w_out, heads=heads, dim_head=dim_head)
    # Tolerance accounts for bf16 MXU operands, bf16 exp path and the
    # approximate reciprocal in the softmax normalization.
    np.testing.assert_allclose(np.asarray(out), np.asarray(ref, dtype=np.float32),
                               rtol=2e-2, atol=2e-2)
    print("KERNEL_OK")
</pallas_src>

<mosaic_0001>
module attributes {stable_mosaic.version = 11 : i64} {
  func.func @_rmsnorm_qkv_kernel(%arg0: i32, %arg1: i32, %arg2: i32, %arg3: memref<1x8x32xf32, #tpu.memory_space<vmem>>, %arg4: memref<1x32xf32, #tpu.memory_space<vmem>>, %arg5: memref<1x32x48xbf16, #tpu.memory_space<vmem>>, %arg6: memref<1x1x8x16xbf16, #tpu.memory_space<vmem>>, %arg7: memref<1x1x8x16xbf16, #tpu.memory_space<vmem>>, %arg8: memref<1x1x8x16xbf16, #tpu.memory_space<vmem>>, %arg9: memref<8x32xbf16, #tpu.memory_space<vmem>>) attributes {dimension_semantics = [#tpu.dimension_semantics<parallel>, #tpu.dimension_semantics<parallel>, #tpu.dimension_semantics<arbitrary>], iteration_bounds = array<i64: 2, 1, 2>, scalar_prefetch = 0 : i64, scratch_operands = 1 : i64, tpu.core_type = #tpu.core_type<tc>, window_params = [{transform_indices = @transform_0, window_bounds = array<i64: 1, 8, 32>}, {pipeline_mode = #tpu.pipeline_mode<synchronous>, transform_indices = @transform_1, window_bounds = array<i64: 1, 32>}, {transform_indices = @transform_2, window_bounds = array<i64: 1, 32, 48>}, {transform_indices = @transform_3, window_bounds = array<i64: 1, 1, 8, 16>}, {transform_indices = @transform_4, window_bounds = array<i64: 1, 1, 8, 16>}, {transform_indices = @transform_5, window_bounds = array<i64: 1, 1, 8, 16>}]} {
    %c0_i32 = arith.constant 0 : i32
    %0 = arith.cmpi eq, %arg2, %c0_i32 : i32
    %1 = arith.extui %0 : i1 to i32
    %c0_i32_0 = arith.constant 0 : i32
    %2 = arith.cmpi ne, %1, %c0_i32_0 : i32
    scf.if %2 {
      %c0_17 = arith.constant 0 : index
      %c0_18 = arith.constant 0 : index
      %c0_19 = arith.constant 0 : index
      %22 = vector.load %arg3[%c0_17, %c0_18, %c0_19] : memref<1x8x32xf32, #tpu.memory_space<vmem>>, vector<1x8x32xf32>
      %23 = vector.shape_cast %22 : vector<1x8x32xf32> to vector<8x32xf32>
      %24 = arith.mulf %23, %23 : vector<8x32xf32>
      %cst_20 = arith.constant dense<0.000000e+00> : vector<8xf32>
      %25 = vector.multi_reduction <add>, %24, %cst_20 [1] : vector<8x32xf32> to vector<8xf32>
      %26 = vector.shape_cast %25 : vector<8xf32> to vector<8x1xf32>
      %cst_21 = arith.constant 3.200000e+01 : f32
      %27 = vector.broadcast %cst_21 : f32 to vector<8x1xf32>
      %28 = arith.divf %26, %27 : vector<8x1xf32>
      %cst_22 = arith.constant 1.1920929E-7 : f32
      %29 = vector.broadcast %cst_22 : f32 to vector<8x1xf32>
      %30 = arith.addf %28, %29 : vector<8x1xf32>
      %31 = math.rsqrt %30 : vector<8x1xf32>
      %32 = vector.broadcast %31 : vector<8x1xf32> to vector<8x32xf32>
      %33 = arith.mulf %23, %32 : vector<8x32xf32>
      %c0_23 = arith.constant 0 : index
      %c0_24 = arith.constant 0 : index
      %34 = vector.load %arg4[%c0_23, %c0_24] : memref<1x32xf32, #tpu.memory_space<vmem>>, vector<1x32xf32>
      %35 = vector.broadcast %34 : vector<1x32xf32> to vector<8x32xf32>
      %36 = arith.mulf %33, %35 : vector<8x32xf32>
      %37 = arith.truncf %36 : vector<8x32xf32> to vector<8x32xbf16>
      %c0_25 = arith.constant 0 : index
      %c0_26 = arith.constant 0 : index
      %38 = vector.load %arg9[%c0_25, %c0_26] : memref<8x32xbf16, #tpu.memory_space<vmem>>, vector<8x32xbf16>
      tpu.vector_store %arg9[%c0_25, %c0_26], %37 {strides = array<i32>} : memref<8x32xbf16, #tpu.memory_space<vmem>>, vector<8x32xbf16>,
    } else {
    }
    %c0 = arith.constant 0 : index
    %c0_1 = arith.constant 0 : index
    %3 = vector.load %arg9[%c0, %c0_1] : memref<8x32xbf16, #tpu.memory_space<vmem>>, vector<8x32xbf16>
    %c0_2 = arith.constant 0 : index
    %c0_3 = arith.constant 0 : index
    %c0_4 = arith.constant 0 : index
    %4 = vector.load %arg5[%c0_2, %c0_3, %c0_4] : memref<1x32x48xbf16, #tpu.memory_space<vmem>>, vector<1x32x48xbf16>
    %5 = vector.shape_cast %4 : vector<1x32x48xbf16> to vector<32x48xbf16>
    %cst = arith.constant dense<0.000000e+00> : vector<8x48xf32>
    %6 = tpu.matmul %3, %5, %cst {dimension_numbers = #tpu.dot_dimension_numbers<[1], [0], [0], [1], [0, 0, 1, 1], [], []>} : vector<8x32xbf16>, vector<32x48xbf16>, vector<8x48xf32> -> vector<8x48xf32>
    %7 = vector.extract_strided_slice %6 {offsets = [0, 0], sizes = [8, 16], strides = [1, 1]} : vector<8x48xf32> to vector<8x16xf32>
    %8 = arith.truncf %7 : vector<8x16xf32> to vector<8x16xbf16>
    %c0_5 = arith.constant 0 : index
    %c0_6 = arith.constant 0 : index
    %c0_7 = arith.constant 0 : index
    %c0_8 = arith.constant 0 : index
    %9 = vector.load %arg6[%c0_5, %c0_6, %c0_7, %c0_8] : memref<1x1x8x16xbf16, #tpu.memory_space<vmem>>, vector<1x1x8x16xbf16>
    %10 = vector.shape_cast %9 : vector<1x1x8x16xbf16> to vector<8x16xbf16>
    %11 = vector.shape_cast %8 : vector<8x16xbf16> to vector<1x1x8x16xbf16>
    tpu.vector_store %arg6[%c0_5, %c0_6, %c0_7, %c0_8], %11 {strides = array<i32>} : memref<1x1x8x16xbf16, #tpu.memory_space<vmem>>, vector<1x1x8x16xbf16>,
    %12 = vector.extract_strided_slice %6 {offsets = [0, 16], sizes = [8, 16], strides = [1, 1]} : vector<8x48xf32> to vector<8x16xf32>
    %13 = arith.truncf %12 : vector<8x16xf32> to vector<8x16xbf16>
    %c0_9 = arith.constant 0 : index
    %c0_10 = arith.constant 0 : index
    %c0_11 = arith.constant 0 : index
    %c0_12 = arith.constant 0 : index
    %14 = vector.load %arg7[%c0_9, %c0_10, %c0_11, %c0_12] : memref<1x1x8x16xbf16, #tpu.memory_space<vmem>>, vector<1x1x8x16xbf16>
    %15 = vector.shape_cast %14 : vector<1x1x8x16xbf16> to vector<8x16xbf16>
    %16 = vector.shape_cast %13 : vector<8x16xbf16> to vector<1x1x8x16xbf16>
    tpu.vector_store %arg7[%c0_9, %c0_10, %c0_11, %c0_12], %16 {strides = array<i32>} : memref<1x1x8x16xbf16, #tpu.memory_space<vmem>>, vector<1x1x8x16xbf16>,
    %17 = vector.extract_strided_slice %6 {offsets = [0, 32], sizes = [8, 16], strides = [1, 1]} : vector<8x48xf32> to vector<8x16xf32>
    %18 = arith.truncf %17 : vector<8x16xf32> to vector<8x16xbf16>
    %c0_13 = arith.constant 0 : index
    %c0_14 = arith.constant 0 : index
    %c0_15 = arith.constant 0 : index
    %c0_16 = arith.constant 0 : index
    %19 = vector.load %arg8[%c0_13, %c0_14, %c0_15, %c0_16] : memref<1x1x8x16xbf16, #tpu.memory_space<vmem>>, vector<1x1x8x16xbf16>
    %20 = vector.shape_cast %19 : vector<1x1x8x16xbf16> to vector<8x16xbf16>
    %21 = vector.shape_cast %18 : vector<8x16xbf16> to vector<1x1x8x16xbf16>
    tpu.vector_store %arg8[%c0_13, %c0_14, %c0_15, %c0_16], %21 {strides = array<i32>} : memref<1x1x8x16xbf16, #tpu.memory_space<vmem>>, vector<1x1x8x16xbf16>,
    return
  }
  func.func @transform_0(%arg0: i32, %arg1: i32, %arg2: i32) -> (i32, i32, i32) {
    %c0_i32 = arith.constant 0 : i32
    %c0_i32_0 = arith.constant 0 : i32
    return %arg0, %arg1, %c0_i32 : i32, i32, i32
  }
  func.func @transform_1(%arg0: i32, %arg1: i32, %arg2: i32) -> (i32, i32) {
    %c0_i32 = arith.constant 0 : i32
    %c0_i32_0 = arith.constant 0 : i32
    %c0_i32_1 = arith.constant 0 : i32
    return %c0_i32, %c0_i32_0 : i32, i32
  }
  func.func @transform_2(%arg0: i32, %arg1: i32, %arg2: i32) -> (i32, i32, i32) {
    %c0_i32 = arith.constant 0 : i32
    %c0_i32_0 = arith.constant 0 : i32
    %c0_i32_1 = arith.constant 0 : i32
    return %arg2, %c0_i32, %c0_i32_0 : i32, i32, i32
  }
  func.func @transform_3(%arg0: i32, %arg1: i32, %arg2: i32) -> (i32, i32, i32, i32) {
    %c0_i32 = arith.constant 0 : i32
    %c0_i32_0 = arith.constant 0 : i32
    return %arg0, %arg2, %arg1, %c0_i32 : i32, i32, i32, i32
  }
  func.func @transform_4(%arg0: i32, %arg1: i32, %arg2: i32) -> (i32, i32, i32, i32) {
    %c0_i32 = arith.constant 0 : i32
    %c0_i32_0 = arith.constant 0 : i32
    return %arg0, %arg2, %arg1, %c0_i32 : i32, i32, i32, i32
  }
  func.func @transform_5(%arg0: i32, %arg1: i32, %arg2: i32) -> (i32, i32, i32, i32) {
    %c0_i32 = arith.constant 0 : i32
    %c0_i32_0 = arith.constant 0 : i32
    return %arg0, %arg2, %arg1, %c0_i32 : i32, i32, i32, i32
  }
}

</mosaic_0001>

<llo_original>
// kernel: tpu_custom_call.1
$region0: #{tpu_custom_call.1}
  #allocation0 [shape = 'u32[]', space=smem, size = 0x4, offset = 0x4, fixed_abs, tag = 'smem constant byte address 0x4 - core index']
  #allocation1 [shape = 'u32[144,128]{1,0:T(1,128)}', space=vmem, size = 0x12000, scoped, tag = 'internal scratch']
  #allocation2 [shape = 'bf16[8,32]{1,0:T(8,128)(2,1)}', space=vmem, size = 0x800, scoped, tag = 'scratch operand']
  %s0 = inlined_call_operand.hbm [shape: f32[2,8,32], index: 0, kind: input, shape index: {}]
  %s1 = inlined_call_operand.vmem [shape: f32[1,32], index: 1, kind: input, shape index: {}]
  %s2 = inlined_call_operand.hbm [shape: bf16[2,32,48], index: 2, kind: input, shape index: {}]
  %s3 = inlined_call_operand.hbm [shape: bf16[2,2,8,16], index: 3, kind: output, shape index: {0}]
  %s4 = inlined_call_operand.hbm [shape: bf16[2,2,8,16], index: 4, kind: output, shape index: {1}]
  %s5 = inlined_call_operand.hbm [shape: bf16[2,2,8,16], index: 5, kind: output, shape index: {2}]
  %6 = xla_tuple %s3, %s4, %s5
  %s7 = sld [smem:[#allocation0]]
  $region73: #{tpu_custom_call.1} parent=0
    _
  %s9 = ssub.s32 1, %s7
  %s10 = scalar_select 0, %s9, %s7
  $region1: #{tpu_custom_call.1} parent=0
    #allocation3 [shape = 'u8[8192]{0}', space=vmem, size = 0x2000, scoped, tag = 'input window, operand 0']
    #allocation4 [shape = 's32[2]{0}', space=sflag, size = 0x8, scoped, tag = 'scoped memory for tpu_custom_call.1']
    #allocation5 [shape = 's32[2]{0}', space=sflag, size = 0x8, scoped, tag = 'scoped memory for tpu_custom_call.1']
    #allocation6 [shape = 'u8[16384]{0}', space=vmem, size = 0x4000, scoped, tag = 'input window, operand 2']
    #allocation7 [shape = 's32[2]{0}', space=sflag, size = 0x8, scoped, tag = 'scoped memory for tpu_custom_call.1']
    #allocation8 [shape = 'u8[4096]{0}', space=vmem, size = 0x1000, scoped, tag = 'output window, operand 0']
    #allocation9 [shape = 'u8[4096]{0}', space=vmem, size = 0x1000, scoped, tag = 'output window, operand 1']
    #allocation10 [shape = 's32[2]{0}', space=sflag, size = 0x8, scoped, tag = 'scoped memory for tpu_custom_call.1']
    #allocation11 [shape = 'u8[4096]{0}', space=vmem, size = 0x1000, scoped, tag = 'output window, operand 2']
    %11 = vsyncpa [#allocation4], 0
    %s12 = scalar_lea.sflag [#allocation4], 1
    %13 = vsyncpa %s12, 0
    %14 = vsyncpa [#allocation7], 0
    %s15 = scalar_lea.sflag [#allocation7], 1
    %16 = vsyncpa %s15, 0
    %17 = vsyncpa [#allocation5], 0
    %s18 = scalar_lea.sflag [#allocation5], 1
    %19 = vsyncpa %s18, 0
    %20 = vsyncpa [#allocation10], 0
    %s21 = scalar_lea.sflag [#allocation10], 1
    %22 = vsyncpa %s21, 0
    loop: start=0, step=1, limit=6
    $region2: #{tpu_custom_call.1} parent=1 // loop_pre_header
      _
    $region3: #{tpu_custom_call.1} parent=1 // loop_header
      %s24 = sphi 0, %s28
      %p25 = scmp.ge.s32.totalorder %s24, 6
      %s31 = sphi 0, %s50
      %s32 = sphi 0, %s46
      %s33 = sphi 0, %s42
      %s34 = sphi 0, %s31
      %s35 = sphi 0, %s32
      %s36 = sphi 0, %s33
      %s37 = sphi 0, %s34
      %s38 = sphi 0, %s35
      %s39 = sphi 0, %s36
      %s55 = sphi 0, %s57
      %s58 = sphi 0, %s55
      %s59 = sphi 0, %s58
      %s75 = sphi 0, %s59
      %s79 = sphi 0, %s79
      %s81 = sphi 0, %s79
      %s82 = sphi 0, %s81
      %s96 = sphi 0, %s82
      %s102 = sphi 0, %s104
      %s105 = sphi 0, %s102
      %s106 = sphi 0, %s105
      %s122 = sphi 0, %s106
      %s132 = sphi 0, %s134
      %s135 = sphi 0, %s132
      %s136 = sphi 0, %s135
      %s152 = sphi 0, %s136
      %s162 = sphi 0, %s164
      %s165 = sphi 0, %s162
      %s166 = sphi 0, %s165
      %s182 = sphi 0, %s166
      %s192 = sphi 0, %s194
      %s195 = sphi 0, %s192
      %s196 = sphi 0, %s195
      %s212 = sphi 0, %s196
    $region4: #{tpu_custom_call.1} parent=1 // loop_header_branch
      %27 = sbr.rel (%p25) target = $region8
    $region5: #{tpu_custom_call.1} parent=1 // loop_body
      %s29 = ssub.s32 %s24, 1
      %s30 = ssub.s32 %s24, 2
      %s40 = sadd.s32 1, %s33
      %p41 = scmp.ge.s32.totalorder %s40, 2
      %s42 = scalar_select %p41, 0, %s40
      %s43 = sadd.s32 1, %s32
      %s44 = scalar_select %p41, %s43, %s32
      %p45 = scmp.ge.s32.totalorder %s44, 1
      %s46 = scalar_select %p45, 0, %s44
      %s47 = sadd.s32 1, %s31
      %s48 = scalar_select %p45, %s47, %s31
      %p49 = scmp.ge.s32.totalorder %s48, 2
      %s50 = scalar_select %p49, 0, %s48
      %s51 = ssub.s32 %s31, %s50
      %s52 = ssub.s32 %s32, %s46
      %s53 = sor.u32 %s51, %s52
      %p54 = scmp.eq.s32.totalorder %s53, 0
      %s56 = sadd.s32 %s55, 1
      %s57 = scalar_select %p54, %s55, %s56
      %p60 = pneg %p54
      %p61 = scmp.eq.s32.totalorder %s24, 3
      %p62 = por %p60, %p61
      %p63 = scmp.ne.s32.totalorder %s55, %s58
      %p64 = scmp.eq.s32.totalorder %s24, 0
      %p65 = por %p63, %p64
      %p66 = scmp.ne.s32.totalorder %s55, %s58
      %p67 = scmp.eq.s32.totalorder %s29, 3
      %p68 = por %p66, %p67
      %p69 = scmp.ne.s32.totalorder %s58, %s59
      %p70 = scmp.eq.s32.totalorder %s29, 0
      %p71 = por %p69, %p70
      %p72 = scmp.ne.s32.totalorder %s58, %s59
      %p73 = scmp.eq.s32.totalorder %s30, 3
      %p74 = por %p72, %p73
      %p76 = scmp.ne.s32.totalorder %s59, %s75
      %p77 = scmp.eq.s32.totalorder %s30, 0
      %p78 = por %p76, %p77
      %s80 = sadd.s32 %s79, 1
      %p83 = scmp.eq.s32.totalorder %s24, 3
      %p84 = scmp.ne.s32.totalorder %s79, %s81
      %p85 = scmp.eq.s32.totalorder %s24, 0
      %p86 = por %p84, %p85
      %p87 = scmp.ne.s32.totalorder %s79, %s81
      %p88 = scmp.eq.s32.totalorder %s29, 3
      %p89 = por %p87, %p88
      %p90 = scmp.ne.s32.totalorder %s81, %s82
      %p91 = scmp.eq.s32.totalorder %s29, 0
      %p92 = por %p90, %p91
      %p93 = scmp.ne.s32.totalorder %s81, %s82
      %p94 = scmp.eq.s32.totalorder %s30, 3
      %p95 = por %p93, %p94
      %p97 = scmp.ne.s32.totalorder %s82, %s96
      %p98 = scmp.eq.s32.totalorder %s30, 0
      %p99 = por %p97, %p98
      %s100 = ssub.s32 %s33, %s42
      %p101 = scmp.eq.s32.totalorder %s100, 0
      %s103 = sadd.s32 %s102, 1
      %s104 = scalar_select %p101, %s102, %s103
      %p107 = pneg %p101
      %p108 = scmp.eq.s32.totalorder %s24, 3
      %p109 = por %p107, %p108
      %p110 = scmp.ne.s32.totalorder %s102, %s105
      %p111 = scmp.eq.s32.totalorder %s24, 0
      %p112 = por %p110, %p111
      %p113 = scmp.ne.s32.totalorder %s102, %s105
      %p114 = scmp.eq.s32.totalorder %s29, 3
      %p115 = por %p113, %p114
      %p116 = scmp.ne.s32.totalorder %s105, %s106
      %p117 = scmp.eq.s32.totalorder %s29, 0
      %p118 = por %p116, %p117
      %p119 = scmp.ne.s32.totalorder %s105, %s106
      %p120 = scmp.eq.s32.totalorder %s30, 3
      %p121 = por %p119, %p120
      %p123 = scmp.ne.s32.totalorder %s106, %s122
      %p124 = scmp.eq.s32.totalorder %s30, 0
      %p125 = por %p123, %p124
      %s126 = ssub.s32 %s31, %s50
      %s127 = ssub.s32 %s33, %s42
      %s128 = sor.u32 %s126, %s127
      %s129 = ssub.s32 %s32, %s46
      %s130 = sor.u32 %s128, %s129
      %p131 = scmp.eq.s32.totalorder %s130, 0
      %s133 = sadd.s32 %s132, 1
      %s134 = scalar_select %p131, %s132, %s133
      %p137 = pneg %p131
      %p138 = scmp.eq.s32.totalorder %s24, 3
      %p139 = por %p137, %p138
      %p140 = scmp.ne.s32.totalorder %s132, %s135
      %p141 = scmp.eq.s32.totalorder %s24, 0
      %p142 = por %p140, %p141
      %p143 = scmp.ne.s32.totalorder %s132, %s135
      %p144 = scmp.eq.s32.totalorder %s29, 3
      %p145 = por %p143, %p144
      %p146 = scmp.ne.s32.totalorder %s135, %s136
      %p147 = scmp.eq.s32.totalorder %s29, 0
      %p148 = por %p146, %p147
      %p149 = scmp.ne.s32.totalorder %s135, %s136
      %p150 = scmp.eq.s32.totalorder %s30, 3
      %p151 = por %p149, %p150
      %p153 = scmp.ne.s32.totalorder %s136, %s152
      %p154 = scmp.eq.s32.totalorder %s30, 0
      %p155 = por %p153, %p154
      %s156 = ssub.s32 %s31, %s50
      %s157 = ssub.s32 %s33, %s42
      %s158 = sor.u32 %s156, %s157
      %s159 = ssub.s32 %s32, %s46
      %s160 = sor.u32 %s158, %s159
      %p161 = scmp.eq.s32.totalorder %s160, 0
      %s163 = sadd.s32 %s162, 1
      %s164 = scalar_select %p161, %s162, %s163
      %p167 = pneg %p161
      %p168 = scmp.eq.s32.totalorder %s24, 3
      %p169 = por %p167, %p168
      %p170 = scmp.ne.s32.totalorder %s162, %s165
      %p171 = scmp.eq.s32.totalorder %s24, 0
      %p172 = por %p170, %p171
      %p173 = scmp.ne.s32.totalorder %s162, %s165
      %p174 = scmp.eq.s32.totalorder %s29, 3
      %p175 = por %p173, %p174
      %p176 = scmp.ne.s32.totalorder %s165, %s166
      %p177 = scmp.eq.s32.totalorder %s29, 0
      %p178 = por %p176, %p177
      %p179 = scmp.ne.s32.totalorder %s165, %s166
      %p180 = scmp.eq.s32.totalorder %s30, 3
      %p181 = por %p179, %p180
      %p183 = scmp.ne.s32.totalorder %s166, %s182
      %p184 = scmp.eq.s32.totalorder %s30, 0
      %p185 = por %p183, %p184
      %s186 = ssub.s32 %s31, %s50
      %s187 = ssub.s32 %s33, %s42
      %s188 = sor.u32 %s186, %s187
      %s189 = ssub.s32 %s32, %s46
      %s190 = sor.u32 %s188, %s189
      %p191 = scmp.eq.s32.totalorder %s190, 0
      %s193 = sadd.s32 %s192, 1
      %s194 = scalar_select %p191, %s192, %s193
      %p197 = pneg %p191
      %p198 = scmp.eq.s32.totalorder %s24, 3
      %p199 = por %p197, %p198
      %p200 = scmp.ne.s32.totalorder %s192, %s195
      %p201 = scmp.eq.s32.totalorder %s24, 0
      %p202 = por %p200, %p201
      %p203 = scmp.ne.s32.totalorder %s192, %s195
      %p204 = scmp.eq.s32.totalorder %s29, 3
      %p205 = por %p203, %p204
      %p206 = scmp.ne.s32.totalorder %s195, %s196
      %p207 = scmp.eq.s32.totalorder %s29, 0
      %p208 = por %p206, %p207
      %p209 = scmp.ne.s32.totalorder %s195, %s196
      %p210 = scmp.eq.s32.totalorder %s30, 3
      %p211 = por %p209, %p210
      %p213 = scmp.ne.s32.totalorder %s196, %s212
      %p214 = scmp.eq.s32.totalorder %s30, 0
      %p215 = por %p213, %p214
      %p216 = scmp.le.s32.totalorder 1, %s24
      %p217 = scmp.lt.s32.totalorder %s24, 5
      %p218 = pnand %p216, %p217
      %p219 = pneg %p218
      // Predicated region
      $region9: #{tpu_custom_call.1} parent=5 // pred_check
        _
      $region10: #{tpu_custom_call.1} parent=5 // pred_check_branch
        %221 = sbr.rel (%p218) target = $region12
      $region11: #{tpu_custom_call.1} parent=5 // pred_region
        %s222 = ssub.s32 %s24, 1
        // Predicated region
        $region13: #{tpu_custom_call.1} parent=11 // pred_check
          %p223 = pneg %p92
        $region14: #{tpu_custom_call.1} parent=11 // pred_check_branch
          %225 = sbr.rel (%p223) target = $region16
        $region15: #{tpu_custom_call.1} parent=11 // pred_region
          _
        $region16: #{tpu_custom_call.1} parent=11 // pred_fallthru
          _
      $region12: #{tpu_custom_call.1} parent=5 // pred_fallthru
        _
      %p226 = scmp.lt.s32.totalorder %s24, 4
      // Predicated region
      $region17: #{tpu_custom_call.1} parent=5 // pred_check
        %p227 = pneg %p226
      $region18: #{tpu_custom_call.1} parent=5 // pred_check_branch
        %229 = sbr.rel (%p227) target = $region20
      $region19: #{tpu_custom_call.1} parent=5 // pred_region
        // Predicated region
        $region21: #{tpu_custom_call.1} parent=19 // pred_check
          %p230 = pneg %p65
        $region22: #{tpu_custom_call.1} parent=19 // pred_check_branch
          %232 = sbr.rel (%p230) target = $region24
        $region23: #{tpu_custom_call.1} parent=19 // pred_region
          %s233 = sand.u32 %s55, 1
          %s234 = scalar_lea.sflag [#allocation4], %s233
          %s235 = sand.u32 %s55, 1
          %s236 = smul.addr %s235, 8
          %s237 = scalar_lea.vmem [#allocation3], %s236
          %s239 = ssub.s32 128, 128
          %240 = vsyncadd %s234, %s239
          %s241 = sadd.s32 %s32, %s31
          %s242 = smul.addr %s241, 128
          %s243 = scalar_lea.hbm %s0, %s242
          %s245 = sshll.u32 %s237, 4
          %s246 = int_to_ptr.vmem [resolvable:$true] %s245
          %248 = dma.hbm_to_vmem [thread:$0]  %s243, 128, %s246, %s234
        $region24: #{tpu_custom_call.1} parent=19 // pred_fallthru
          _
        // Predicated region
        $region25: #{tpu_custom_call.1} parent=19 // pred_check
          %p249 = pneg %p112
        $region26: #{tpu_custom_call.1} parent=19 // pred_check_branch
          %251 = sbr.rel (%p249) target = $region28
        $region27: #{tpu_custom_call.1} parent=19 // pred_region
          %s252 = sand.u32 %s102, 1
          %s253 = scalar_lea.sflag [#allocation7], %s252
          %s254 = sand.u32 %s102, 1
          %s255 = smul.addr %s254, 16
          %s256 = scalar_lea.vmem [#allocation6], %s255
          %s258 = ssub.s32 256, 256
          %259 = vsyncadd %s253, %s258
          %s260 = smul.addr %s33, 4
          %s261 = smul.addr %s260, 64
          %s262 = scalar_lea.hbm %s2, %s261
          %s263 = sshll.u32 %s256, 4
          %s264 = int_to_ptr.vmem [resolvable:$true] %s263
          %269 = dma.hbm_to_vmem [thread:$0]  %s262, 256, %s264, %s253, 64, 64, 4
        $region28: #{tpu_custom_call.1} parent=19 // pred_fallthru
          _
      $region20: #{tpu_custom_call.1} parent=5 // pred_fallthru
        _
      %p270 = scmp.le.s32.totalorder 1, %s24
      %p271 = scmp.lt.s32.totalorder %s24, 5
      %p272 = pnand %p270, %p271
      %p273 = pneg %p272
      // Predicated region
      $region29: #{tpu_custom_call.1} parent=5 // pred_check
        _
      $region30: #{tpu_custom_call.1} parent=5 // pred_check_branch
        %275 = sbr.rel (%p272) target = $region32
      $region31: #{tpu_custom_call.1} parent=5 // pred_region
        %s276 = ssub.s32 %s24, 1
        %s277 = sand.u32 %s58, 1
        %s278 = scalar_lea.sflag [#allocation4], %s277
        %s279 = sand.u32 %s58, 1
        %s280 = smul.addr %s279, 8
        %s281 = scalar_lea.vmem [#allocation3], %s280
        // Predicated region
        $region33: #{tpu_custom_call.1} parent=31 // pred_check
          %p282 = pneg %p71
        $region34: #{tpu_custom_call.1} parent=31 // pred_check_branch
          %284 = sbr.rel (%p282) target = $region36
        $region35: #{tpu_custom_call.1} parent=31 // pred_region
          %285 = dma.done %s278, 128
        $region36: #{tpu_custom_call.1} parent=31 // pred_fallthru
          _
        %s286 = sand.u32 %s105, 1
        %s287 = scalar_lea.sflag [#allocation7], %s286
        %s288 = sand.u32 %s105, 1
        %s289 = smul.addr %s288, 16
        %s290 = scalar_lea.vmem [#allocation6], %s289
        // Predicated region
        $region37: #{tpu_custom_call.1} parent=31 // pred_check
          %p291 = pneg %p118
        $region38: #{tpu_custom_call.1} parent=31 // pred_check_branch
          %293 = sbr.rel (%p291) target = $region40
        $region39: #{tpu_custom_call.1} parent=31 // pred_region
          %294 = dma.done %s287, 256
        $region40: #{tpu_custom_call.1} parent=31 // pred_fallthru
          _
        %s295 = sand.u32 %s58, 1
        %s296 = scalar_lea.sflag [#allocation4], %s295
        %s297 = sand.u32 %s58, 1
        %s298 = smul.addr %s297, 8
        %s299 = scalar_lea.vmem [#allocation3], %s298
        %p300 = pneg %p71
        %p301 = pneg %p68
        %p302 = pneg %p92
        %p303 = pneg %p89
        %s304 = sand.u32 %s105, 1
        %s305 = scalar_lea.sflag [#allocation7], %s304
        %s306 = sand.u32 %s105, 1
        %s307 = smul.addr %s306, 16
        %s308 = scalar_lea.vmem [#allocation6], %s307
        %p309 = pneg %p118
        %p310 = pneg %p115
        %p311 = pneg %p148
        %p312 = pneg %p145
        %s313 = sand.u32 %s135, 1
        %s314 = scalar_lea.sflag [#allocation5], %s313
        %s315 = sand.u32 %s135, 1
        %s316 = smul.addr %s315, 4
        %s317 = scalar_lea.vmem [#allocation8], %s316
        %p318 = pneg %p178
        %p319 = pneg %p175
        %s320 = sand.u32 %s29, 1
        %s321 = scalar_lea.sflag [#allocation10], %s320
        %s322 = sand.u32 %s165, 1
        %s323 = smul.addr %s322, 4
        %s324 = scalar_lea.vmem [#allocation9], %s323
        %p325 = pneg %p208
        %p326 = pneg %p205
        %s327 = sand.u32 %s29, 1
        %s328 = scalar_lea.sflag [#allocation10], %s327
        %s329 = sand.u32 %s195, 1
        %s330 = smul.addr %s329, 4
        %s331 = scalar_lea.vmem [#allocation11], %s330
        %p333 = scmp.eq.s32.totalorder %s36, 0
        // Predicated region
        $region41: #{tpu_custom_call.1} parent=31 // pred_check
          %p334 = pneg %p333
        $region42: #{tpu_custom_call.1} parent=31 // pred_check_branch
          %336 = sbr.rel (%p334) target = $region44
        $region43: #{tpu_custom_call.1} parent=31 // pred_region
          %v337 = vld [vmem:[%s281] sm:$0xff]
          %v338 = vmul.f32 %v337, %v337
          %vm339 = vcmask 261120
          %v340 = vsel %vm339, %v338, 0.0
          %341 = vadd.xlane.f32.xlu0 %v340
          %v342 = vpop.xlane.xlu0 %341
          %v343 = vrcp.pop 32.0
          %v344 = vmul.f32 %v342, %v343
          %v345 = vadd.f32 %v344, 1.1920929e-07
          %v346 = vrsqrt.pop %v345
          %v347 = vmul.f32 %v337, %v346
          %v348 = vld [vmem:[%s1] sm:$0x1]
          %v350 = vlaneseq
          %v351 = vshrl.u32 %v350, 7
          %v352 = vsub.s32 0, %v351
          %v353 = vrot.slane %v348, %v352
          %v355 = vmul.f32 %v347, %v353
          %v356 = vpack.c.bf16 %v355, %v355
          %vm357 = vcmask 257024
          %358 = vst.msk [vmem:[#allocation2] sm:$0xf] %vm357, %v356
        $region44: #{tpu_custom_call.1} parent=31 // pred_fallthru
          _
        %v359 = vld [vmem:[#allocation2] sm:$0xf]
        %v360 = vld [vmem:[%s290] sm:$0xf]
        %v361 = vld [vmem:[%s290 + $0x4] sm:$0xf]
        %v362 = vld [vmem:[%s290 + $0x8] sm:$0xf]
        %v363 = vld [vmem:[%s290 + $0xc] sm:$0xf]
        %v368 = vunpack.c.l.b16 %v360
        %v369 = vunpack.c.l.b16 %v361
        %v370 = vunpack.c.l.b16 %v362
        %v371 = vunpack.c.l.b16 %v363
        %v372 = vpack.c.b16 %v369, %v368
        %v373 = vpack.c.b16 %v371, %v370
        %vm376 = vcmask 261120
        %v378 = vsel %vm376, %v359, 0
        %380 = vmatprep.subr.bf16.mxu0 0
        %381 = vmatpush1.bf16.msra.mxu0 %v372
        %382 = vmatprep.subr.bf16.mxu0 0
        %383 = vmatpush1.bf16.msra.mxu0 %v373
        %384 = vmatprep.subr.bf16.mxu0 0
        %385 = vmatpush1.bf16.msra.mxu0 0
        %386 = vmatprep.subr.bf16.mxu0 0
        %387 = vmatpush1.bf16.msra.mxu0 0
        %388 = vmatprep.subr.bf16.mxu0 0
        %389 = vmatpush1.bf16.msra.mxu0 0
        %390 = vmatprep.subr.bf16.mxu0 0
        %391 = vmatpush1.bf16.msra.mxu0 0
        %392 = vmatprep.subr.bf16.mxu0 0
        %393 = vmatpush1.bf16.msra.mxu0 0
        %394 = vmatprep.subr.bf16.mxu0 0
        %395 = vmatpush1.bf16.msra.mxu0 0
        %396 = vmatprep.subr.bf16.mxu0 0
        %397 = vmatpush1.bf16.msra.mxu0 0
        %398 = vmatprep.subr.bf16.mxu0 0
        %399 = vmatpush1.bf16.msra.mxu0 0
        %400 = vmatprep.subr.bf16.mxu0 0
        %401 = vmatpush1.bf16.msra.mxu0 0
        %402 = vmatprep.subr.bf16.mxu0 0
        %403 = vmatpush1.bf16.msra.mxu0 0
        %404 = vmatprep.subr.bf16.mxu0 0
        %405 = vmatpush1.bf16.msra.mxu0 0
        %406 = vmatprep.subr.bf16.mxu0 0
        %407 = vmatpush1.bf16.msra.mxu0 0
        %408 = vmatprep.subr.bf16.mxu0 0
        %409 = vmatpush1.bf16.msra.mxu0 0
        %410 = vmatprep.subr.bf16.mxu0 0
        %411 = vmatpush1.bf16.msra.mxu0 0
        %412 = vmatprep.mubr.bf16.mxu0 0
        %413 = vmatmul.mubr.bf16.gmra.mrb[0].mxu0 %v378
        %v414 = vpop.f32.mrb[0].mxu0
        %v415 = vadd.f32 0.0, %v414
        %v416 = vpop.f32.mrb[0].mxu0
        %v417 = vpop.f32.mrb[0].mxu0
        %v418 = vpop.f32.mrb[0].mxu0
        %419 = vdwg.mxu0
        %v420 = vpack.c.bf16 %v415, %v415
        %vm421 = vcmask 125952
        %422 = vst.msk [vmem:[%s317] sm:$0xf] %vm421, %v420
        %v424 = vunpack.c.l.b16 %v420
        %v425 = vpack.c.b16 %v424, %v424
        %426 = vrot.lane.b32.xlu0 %v425, 112
        %v427 = vpop.permute.xlu0 %426
        %429 = vst.msk [vmem:[%s324] sm:$0xf] %vm421, %v427
        %430 = vrot.lane.b32.xlu0 %v425, 96
        %v431 = vpop.permute.xlu0 %430
        %433 = vst.msk [vmem:[%s331] sm:$0xf] %vm421, %v431
        %s434 = sand.u32 %s135, 1
        %s435 = scalar_lea.sflag [#allocation5], %s434
        %s436 = sand.u32 %s135, 1
        %s437 = smul.addr %s436, 4
        %s438 = scalar_lea.vmem [#allocation8], %s437
        %s439 = sand.u32 %s29, 1
        %s440 = scalar_lea.sflag [#allocation10], %s439
        %s441 = sand.u32 %s165, 1
        %s442 = smul.addr %s441, 4
        %s443 = scalar_lea.vmem [#allocation9], %s442
        %s444 = sand.u32 %s29, 1
        %s445 = scalar_lea.sflag [#allocation10], %s444
        %s446 = sand.u32 %s195, 1
        %s447 = smul.addr %s446, 4
        %s448 = scalar_lea.vmem [#allocation11], %s447
        // Predicated region
        $region45: #{tpu_custom_call.1} parent=31 // pred_check
          %p449 = pneg %p145
        $region46: #{tpu_custom_call.1} parent=31 // pred_check_branch
          %451 = sbr.rel (%p449) target = $region48
        $region47: #{tpu_custom_call.1} parent=31 // pred_region
          %s453 = ssub.s32 64, 64
          %454 = vsyncadd %s435, %s453
          %s455 = sadd.s32 %s35, %s36
          %s456 = smul.addr %s34, 2
          %s457 = sadd.s32 %s455, %s456
          %s458 = smul.addr %s457, 64
          %s459 = scalar_lea.hbm %s3, %s458
          %s461 = sshll.u32 %s438, 4
          %s462 = int_to_ptr.vmem [resolvable:$true] %s461
          %464 = dma.vmem_to_hbm [thread:$0]  %s462, 64, %s459, %s435
        $region48: #{tpu_custom_call.1} parent=31 // pred_fallthru
          _
        // Predicated region
        $region49: #{tpu_custom_call.1} parent=31 // pred_check
          %p465 = pneg %p175
        $region50: #{tpu_custom_call.1} parent=31 // pred_check_branch
          %467 = sbr.rel (%p465) target = $region52
        $region51: #{tpu_custom_call.1} parent=31 // pred_region
          %s469 = ssub.s32 64, 64
          %470 = vsyncadd %s440, %s469
          %s471 = sadd.s32 %s35, %s36
          %s472 = smul.addr %s34, 2
          %s473 = sadd.s32 %s471, %s472
          %s474 = smul.addr %s473, 64
          %s475 = scalar_lea.hbm %s4, %s474
          %s477 = sshll.u32 %s443, 4
          %s478 = int_to_ptr.vmem [resolvable:$true] %s477
          %480 = dma.vmem_to_hbm [thread:$0]  %s478, 64, %s475, %s440
        $region52: #{tpu_custom_call.1} parent=31 // pred_fallthru
          _
        // Predicated region
        $region53: #{tpu_custom_call.1} parent=31 // pred_check
          %p481 = pneg %p205
        $region54: #{tpu_custom_call.1} parent=31 // pred_check_branch
          %483 = sbr.rel (%p481) target = $region56
        $region55: #{tpu_custom_call.1} parent=31 // pred_region
          %s485 = ssub.s32 64, 64
          %486 = vsyncadd %s445, %s485
          %s487 = sadd.s32 %s35, %s36
          %s488 = smul.addr %s34, 2
          %s489 = sadd.s32 %s487, %s488
          %s490 = smul.addr %s489, 64
          %s491 = scalar_lea.hbm %s5, %s490
          %s493 = sshll.u32 %s448, 4
          %s494 = int_to_ptr.vmem [resolvable:$true] %s493
          %496 = dma.vmem_to_hbm [thread:$0]  %s494, 64, %s491, %s445
        $region56: #{tpu_custom_call.1} parent=31 // pred_fallthru
          _
      $region32: #{tpu_custom_call.1} parent=5 // pred_fallthru
        _
      %p497 = scmp.le.s32.totalorder 2, %s24
      // Predicated region
      $region57: #{tpu_custom_call.1} parent=5 // pred_check
        %p498 = pneg %p497
      $region58: #{tpu_custom_call.1} parent=5 // pred_check_branch
        %500 = sbr.rel (%p498) target = $region60
      $region59: #{tpu_custom_call.1} parent=5 // pred_region
        %s501 = ssub.s32 %s24, 2
        // Predicated region
        $region61: #{tpu_custom_call.1} parent=59 // pred_check
          %p502 = pneg %p151
        $region62: #{tpu_custom_call.1} parent=59 // pred_check_branch
          %504 = sbr.rel (%p502) target = $region64
        $region63: #{tpu_custom_call.1} parent=59 // pred_region
          %s505 = sand.u32 %s136, 1
          %s506 = scalar_lea.sflag [#allocation5], %s505
          %s507 = sand.u32 %s136, 1
          %s508 = smul.addr %s507, 4
          %s509 = scalar_lea.vmem [#allocation8], %s508
          %510 = dma.done %s506, 64
        $region64: #{tpu_custom_call.1} parent=59 // pred_fallthru
          _
        // Predicated region
        $region65: #{tpu_custom_call.1} parent=59 // pred_check
          %p511 = pneg %p181
        $region66: #{tpu_custom_call.1} parent=59 // pred_check_branch
          %513 = sbr.rel (%p511) target = $region68
        $region67: #{tpu_custom_call.1} parent=59 // pred_region
          %s514 = sand.u32 %s30, 1
          %s515 = scalar_lea.sflag [#allocation10], %s514
          %s516 = sand.u32 %s166, 1
          %s517 = smul.addr %s516, 4
          %s518 = scalar_lea.vmem [#allocation9], %s517
          %519 = dma.done %s515, 64
        $region68: #{tpu_custom_call.1} parent=59 // pred_fallthru
          _
        // Predicated region
        $region69: #{tpu_custom_call.1} parent=59 // pred_check
          %p520 = pneg %p211
        $region70: #{tpu_custom_call.1} parent=59 // pred_check_branch
          %522 = sbr.rel (%p520) target = $region72
        $region71: #{tpu_custom_call.1} parent=59 // pred_region
          %s523 = sand.u32 %s30, 1
          %s524 = scalar_lea.sflag [#allocation10], %s523
          %s525 = sand.u32 %s196, 1
          %s526 = smul.addr %s525, 4
          %s527 = scalar_lea.vmem [#allocation11], %s526
          %528 = dma.done %s524, 64
        $region72: #{tpu_custom_call.1} parent=59 // pred_fallthru
          _
      $region60: #{tpu_custom_call.1} parent=5 // pred_fallthru
        _
    $region6: #{tpu_custom_call.1} parent=1 // loop_footer
      %s28 = sadd.s32 1, %s24
    $region7: #{tpu_custom_call.1} parent=1 // loop_footer_branch
      %23 = sbr.rel target = $region3
    $region8: #{tpu_custom_call.1} parent=1 // loop_exit
      _
    %529 = vsyncpa [#allocation4], 1
    %s530 = scalar_lea.sflag [#allocation4], 1
    %531 = vsyncpa %s530, 1
    %532 = vsyncpa [#allocation7], 1
    %s533 = scalar_lea.sflag [#allocation7], 1
    %534 = vsyncpa %s533, 1
    %535 = vsyncpa [#allocation5], 1
    %s536 = scalar_lea.sflag [#allocation5], 1
    %537 = vsyncpa %s536, 1
    %538 = vsyncpa [#allocation10], 1
    %s539 = scalar_lea.sflag [#allocation10], 1
    %540 = vsyncpa %s539, 1

</llo_original>
